<compile_context>
chip_gen: v5e
topology: v5e:2x2
jax: 0.10.0
libtpu: 0.0.40
codegen_flags: <defaults>
</compile_context>

<pallas_src>
import functools

import jax
import jax.numpy as jnp
from jax import lax
from jax.experimental import pallas as pl
from jax.experimental.pallas import tpu as pltpu


def _mlp_kernel(x_ref, w_ref, wob_ref, o_ref, *, d0, n_hidden):
    """Fused forward: n_hidden x (matmul + bias + ReLU), then 1-wide output.

    x_ref:   (tile_b, d0)            activations, batch on sublanes
    w_ref:   (n_hidden, dmax, dmax)  pre-transposed (n_in, n_out) weight slabs
    wob_ref: (n_hidden + 2, dmax)    hidden biases, output weight row, out bias
    o_ref:   (1, tile_b)             lane-dense output row (batch on lanes)
    """
    h = x_ref[...]                                   # (tile_b, d0) f32
    dmax = w_ref.shape[-1]
    k = d0
    for l in range(n_hidden):                        # static Python loop
        wt = w_ref[l, :k, :]                         # (k, dmax) pre-transposed
        b = wob_ref[l:l + 1, :]                      # (1, dmax)
        h = jnp.dot(h, wt, preferred_element_type=jnp.float32) + b
        h = jnp.maximum(h, 0.0)                      # ReLU
        k = dmax
    # Output layer (1 unit), lane-dense: (1, dmax) . (tile_b, dmax)^T on the
    # idle MXU -> (1, tile_b), so the per-row scalars land on the lane axis
    # and the store is a full unmasked vst instead of masked (tile_b,1) ones.
    wo = wob_ref[n_hidden:n_hidden + 1, :]           # (1, dmax)
    bo = wob_ref[n_hidden + 1:n_hidden + 2, 0:1]     # (1, 1)
    out = lax.dot_general(wo, h, (((1,), (1,)), ((), ())),
                          preferred_element_type=jnp.float32)
    o_ref[...] = out + bo                            # (1, tile_b)


def init_params(key, architecture):
    """nn.Linear-style deterministic init: uniform(+-1/sqrt(fan_in))."""
    dims = list(architecture) + [1]
    params = []
    for i in range(len(dims) - 1):
        n_in, n_out = dims[i], dims[i + 1]
        key, kw, kb = jax.random.split(key, 3)
        bound = float(n_in) ** -0.5
        w = jax.random.uniform(kw, (n_out, n_in), jnp.float32, -bound, bound)
        b = jax.random.uniform(kb, (n_out,), jnp.float32, -bound, bound)
        params.append((w, b))
    return params


def pack_params(params):
    """Pack all layers into 2 contiguous, lane-friendly f32 arrays.

    Hidden widths are padded to a multiple of 128 lanes so the unrolled layer
    loop runs on full unmasked vregs (padded rows/cols/biases are zero, so no
    wrong contributions leak through ReLU or the output layer).
    """
    *hidden, (wo, bo) = params
    n_hidden = len(hidden)
    d0 = hidden[0][0].shape[1]
    widths = [d0] + [w.shape[0] for w, _ in hidden] + [wo.shape[1]]
    dmax = max(widths)
    dmax = max(128, -(-dmax // 128) * 128)            # lane-align hidden width

    w_packed = jnp.zeros((n_hidden, dmax, dmax), jnp.float32)
    wob = jnp.zeros((n_hidden + 2, dmax), jnp.float32)
    for l, (w, b) in enumerate(hidden):
        n_out, n_in = w.shape
        w_packed = w_packed.at[l, :n_in, :n_out].set(w.T)   # pre-transpose
        wob = wob.at[l, :n_out].set(b)
    wob = wob.at[n_hidden, :wo.shape[1]].set(wo[0])          # output weight row
    wob = wob.at[n_hidden + 1, 0].set(bo[0])                 # output bias
    return w_packed, wob, d0, n_hidden


def net_forward(x, w_packed, wob, d0, n_hidden, *, tile_b=None,
                gridless_max_batch=4096, max_tile_b=4096, min_grid_steps=8):
    """Fused forward.  x: (B, d0) f32.  Returns (B, 1) f32."""
    B = x.shape[0]
    dmax = w_packed.shape[-1]
    kern = functools.partial(_mlp_kernel, d0=d0, n_hidden=n_hidden)

    flops = 2 * B * (d0 * dmax + max(n_hidden - 1, 0) * dmax * dmax + dmax)
    bytes_accessed = 4 * (x.size + w_packed.size + wob.size + B)
    cost = pl.CostEstimate(flops=flops, transcendentals=0,
                           bytes_accessed=bytes_accessed)

    if B <= gridless_max_batch:
        # Grid-less call: whole x / weights / output resident in VMEM in one
        # shot, zero pipeline bookkeeping.  At the 4096-row default the slab
        # (x 256 KiB + intermediates ~2 MiB) is far under v5e's 16 MiB scoped
        # VMEM default, so no vmem_limit_bytes override is needed.
        out = pl.pallas_call(
            kern,
            out_shape=jax.ShapeDtypeStruct((1, B), jnp.float32),
            cost_estimate=cost,
        )(x, w_packed, wob)
        return out.reshape(B, 1)

    # Throughput path: tile the batch axis; weights stay resident (constant
    # index_map -> no re-DMA across steps).
    if tile_b is None:
        # As big as possible while keeping >= min_grid_steps steps, so v7x
        # still gets >= min_grid_steps/2 pipelined steps per TensorCore.
        tile_b = min(max_tile_b, (B // min_grid_steps))
    tile_b = max(128, (tile_b // 128) * 128)          # lane-aligned tile
    n_steps = pl.cdiv(B, tile_b)
    Bp = n_steps * tile_b
    xp = x if Bp == B else jnp.pad(x, ((0, Bp - B), (0, 0)))

    out = pl.pallas_call(
        kern,
        grid=(n_steps,),
        in_specs=[
            pl.BlockSpec((tile_b, d0), lambda i: (i, 0)),
            pl.BlockSpec(w_packed.shape, lambda i: (0, 0, 0)),
            pl.BlockSpec(wob.shape, lambda i: (0, 0)),
        ],
        out_specs=pl.BlockSpec((1, tile_b), lambda i: (0, i)),
        out_shape=jax.ShapeDtypeStruct((1, Bp), jnp.float32),
        compiler_params=pltpu.CompilerParams(
            dimension_semantics=("parallel",)   # v7x: shard batch over 2 TCs
        ),
        cost_estimate=cost,
    )(xp, w_packed, wob)
    return out.reshape(-1)[:B].reshape(B, 1)


def net_forward_ref(x, params):
    """Pure-JAX reference of the same forward pass."""
    h = x
    for w, b in params[:-1]:
        h = jnp.maximum(h @ w.T + b, 0.0)
    wo, bo = params[-1]
    return h @ wo.T + bo


if __name__ == "__main__":
    key = jax.random.PRNGKey(0)
    k_x, k_p, k_x2, k_x3 = jax.random.split(key, 4)

    # architecture = [16, 32, 32] -> nl == 2 -> n1 -> relu -> n2 -> relu -> output(1)
    architecture = (16, 32, 32)
    params = init_params(k_p, architecture)
    w_packed, wob, d0, n_hidden = pack_params(params)

    # 1) Small batch: single grid-less fused call.
    x = jax.random.normal(k_x, (8, architecture[0]), jnp.float32)
    out = jax.block_until_ready(net_forward(x, w_packed, wob, d0, n_hidden))
    ref = net_forward_ref(x, params)
    assert out.shape == (8, 1)
    assert jnp.allclose(out, ref, atol=1e-4, rtol=1e-4)

    # 2) Large batch: batch-tiled grid path (auto tile_b=1024 -> 8 steps,
    #    "parallel" so v7x runs 4 pipelined steps per TensorCore).
    xb = jax.random.normal(k_x2, (8192, architecture[0]), jnp.float32)
    outb = jax.block_until_ready(net_forward(xb, w_packed, wob, d0, n_hidden))
    refb = net_forward_ref(xb, params)
    assert outb.shape == (8192, 1)
    assert jnp.allclose(outb, refb, atol=1e-4, rtol=1e-4)

    # 3) Ragged batch: exercises the pad-to-tile + slice path (no hard raise).
    xr = jax.random.normal(k_x3, (700, architecture[0]), jnp.float32)
    outr = jax.block_until_ready(
        net_forward(xr, w_packed, wob, d0, n_hidden,
                    tile_b=256, gridless_max_batch=256))
    refr = net_forward_ref(xr, params)
    assert outr.shape == (700, 1)
    assert jnp.allclose(outr, refr, atol=1e-4, rtol=1e-4)

    print("KERNEL_OK")
</pallas_src>

<mosaic_0001>
module attributes {stable_mosaic.version = 11 : i64} {
  func.func @_mlp_kernel(%arg0: memref<8x16xf32, #tpu.memory_space<vmem>>, %arg1: memref<2x128x128xf32, #tpu.memory_space<vmem>>, %arg2: memref<4x128xf32, #tpu.memory_space<vmem>>, %arg3: memref<1x8xf32, #tpu.memory_space<vmem>>) attributes {dimension_semantics = [], scalar_prefetch = 0 : i64, scratch_operands = 0 : i64, tpu.core_type = #tpu.core_type<tc>} {
    %c0 = arith.constant 0 : index
    %c0_0 = arith.constant 0 : index
    %0 = vector.load %arg0[%c0, %c0_0] : memref<8x16xf32, #tpu.memory_space<vmem>>, vector<8x16xf32>
    %c0_1 = arith.constant 0 : index
    %c0_2 = arith.constant 0 : index
    %c0_3 = arith.constant 0 : index
    %1 = vector.load %arg1[%c0_1, %c0_2, %c0_3] : memref<2x128x128xf32, #tpu.memory_space<vmem>>, vector<1x16x128xf32>
    %2 = vector.shape_cast %1 : vector<1x16x128xf32> to vector<16x128xf32>
    %c0_4 = arith.constant 0 : index
    %c0_5 = arith.constant 0 : index
    %3 = vector.load %arg2[%c0_4, %c0_5] : memref<4x128xf32, #tpu.memory_space<vmem>>, vector<1x128xf32>
    %cst = arith.constant dense<0.000000e+00> : vector<8x128xf32>
    %4 = tpu.matmul %0, %2, %cst {dimension_numbers = #tpu.dot_dimension_numbers<[1], [0], [0], [1], [0, 0, 1, 1], [], []>} : vector<8x16xf32>, vector<16x128xf32>, vector<8x128xf32> -> vector<8x128xf32>
    %5 = vector.broadcast %3 : vector<1x128xf32> to vector<8x128xf32>
    %6 = arith.addf %4, %5 : vector<8x128xf32>
    %cst_6 = arith.constant 0.000000e+00 : f32
    %7 = vector.broadcast %cst_6 : f32 to vector<8x128xf32>
    %8 = arith.maximumf %6, %7 : vector<8x128xf32>
    %c1 = arith.constant 1 : index
    %c0_7 = arith.constant 0 : index
    %c0_8 = arith.constant 0 : index
    %9 = vector.load %arg1[%c1, %c0_7, %c0_8] : memref<2x128x128xf32, #tpu.memory_space<vmem>>, vector<1x128x128xf32>
    %10 = vector.shape_cast %9 : vector<1x128x128xf32> to vector<128x128xf32>
    %c1_9 = arith.constant 1 : index
    %c0_10 = arith.constant 0 : index
    %11 = vector.load %arg2[%c1_9, %c0_10] : memref<4x128xf32, #tpu.memory_space<vmem>>, vector<1x128xf32>
    %cst_11 = arith.constant dense<0.000000e+00> : vector<8x128xf32>
    %12 = tpu.matmul %8, %10, %cst_11 {dimension_numbers = #tpu.dot_dimension_numbers<[1], [0], [0], [1], [0, 0, 1, 1], [], []>} : vector<8x128xf32>, vector<128x128xf32>, vector<8x128xf32> -> vector<8x128xf32>
    %13 = vector.broadcast %11 : vector<1x128xf32> to vector<8x128xf32>
    %14 = arith.addf %12, %13 : vector<8x128xf32>
    %cst_12 = arith.constant 0.000000e+00 : f32
    %15 = vector.broadcast %cst_12 : f32 to vector<8x128xf32>
    %16 = arith.maximumf %14, %15 : vector<8x128xf32>
    %c2 = arith.constant 2 : index
    %c0_13 = arith.constant 0 : index
    %17 = vector.load %arg2[%c2, %c0_13] : memref<4x128xf32, #tpu.memory_space<vmem>>, vector<1x128xf32>
    %c3 = arith.constant 3 : index
    %c0_14 = arith.constant 0 : index
    %18 = vector.load %arg2[%c3, %c0_14] : memref<4x128xf32, #tpu.memory_space<vmem>>, vector<1x1xf32>
    %cst_15 = arith.constant dense<0.000000e+00> : vector<1x8xf32>
    %19 = tpu.matmul %17, %16, %cst_15 {dimension_numbers = #tpu.dot_dimension_numbers<[1], [1], [0], [0], [0, 0, 1, 0], [], []>} : vector<1x128xf32>, vector<8x128xf32>, vector<1x8xf32> -> vector<1x8xf32>
    %20 = vector.broadcast %18 : vector<1x1xf32> to vector<1x8xf32>
    %21 = arith.addf %19, %20 : vector<1x8xf32>
    %c0_16 = arith.constant 0 : index
    %c0_17 = arith.constant 0 : index
    %22 = vector.load %arg3[%c0_16, %c0_17] : memref<1x8xf32, #tpu.memory_space<vmem>>, vector<1x8xf32>
    tpu.vector_store %arg3[%c0_16, %c0_17], %21 {strides = array<i32>} : memref<1x8xf32, #tpu.memory_space<vmem>>, vector<1x8xf32>,
    return
  }
}

</mosaic_0001>

<llo_original>
// kernel: tpu_custom_call.1
$region0: #{tpu_custom_call.1}
  #allocation0 [shape = 'u32[]', space=smem, size = 0x4, offset = 0x4, fixed_abs, tag = 'smem constant byte address 0x4 - core index']
  #allocation1 [shape = 'u32[72,128]{1,0:T(1,128)}', space=vmem, size = 0x9000, scoped, tag = 'internal scratch']
  %s0 = inlined_call_operand.hbm [shape: f32[8,16], index: 0, kind: input, shape index: {}]
  %s1 = inlined_call_operand.hbm [shape: f32[2,128,128], index: 1, kind: input, shape index: {}]
  %s2 = inlined_call_operand.hbm [shape: f32[4,128], index: 2, kind: input, shape index: {}]
  %s3 = inlined_call_operand.hbm [shape: f32[1,8], index: 3, kind: output, shape index: {}]
  %s4 = sld [smem:[#allocation0]]
  $region34: #{tpu_custom_call.1} parent=0
    _
  %s6 = ssub.s32 1, %s4
  %s7 = scalar_select 0, %s6, %s4
  $region1: #{tpu_custom_call.1} parent=0
    #allocation2 [shape = 'u8[4096]{0}', space=vmem, size = 0x1000, scoped, tag = 'input window, operand 0, single buffered']
    #allocation3 [shape = 's32[1]{0}', space=sflag, size = 0x4, scoped, tag = 'scoped memory for tpu_custom_call.1']
    #allocation4 [shape = 's32[1]{0}', space=sflag, size = 0x4, scoped, tag = 'scoped memory for tpu_custom_call.1']
    #allocation5 [shape = 'u8[131072]{0}', space=vmem, size = 0x20000, scoped, tag = 'input window, operand 1, single buffered']
    #allocation6 [shape = 's32[1]{0}', space=sflag, size = 0x4, scoped, tag = 'scoped memory for tpu_custom_call.1']
    #allocation7 [shape = 'u8[2048]{0}', space=vmem, size = 0x800, scoped, tag = 'input window, operand 2, single buffered']
    #allocation8 [shape = 'u8[512]{0}', space=vmem, size = 0x400, scoped, tag = 'output window, operand 0, single buffered']
    %8 = vsyncpa [#allocation3], 0
    %9 = vsyncpa [#allocation6], 0
    %10 = vsyncpa [#allocation4], 0
    // Predicated region
    $region2: #{tpu_custom_call.1} parent=1 // pred_check
      _
    $region3: #{tpu_custom_call.1} parent=1 // pred_check_branch
      %12 = sbr.rel (0) target = $region5
    $region4: #{tpu_custom_call.1} parent=1 // pred_region
      %14 = vsyncadd [#allocation3], 0
      %s16 = sshll.u32 %s0, 4
      %s17 = int_to_ptr.hbm [resolvable:$true] %s16
      %s18 = sshll.u32 [#allocation2], 4
      %s19 = int_to_ptr.vmem [resolvable:$true] %s18
      %21 = dma.hbm_to_vmem [thread:$0]  %s17, 128, %s19, [#allocation3]
    $region5: #{tpu_custom_call.1} parent=1 // pred_fallthru
      _
    // Predicated region
    $region6: #{tpu_custom_call.1} parent=1 // pred_check
      _
    $region7: #{tpu_custom_call.1} parent=1 // pred_check_branch
      %23 = sbr.rel (0) target = $region9
    $region8: #{tpu_custom_call.1} parent=1 // pred_region
      %25 = vsyncadd [#allocation6], 0
      %s26 = sshll.u32 %s1, 4
      %s27 = int_to_ptr.hbm [resolvable:$true] %s26
      %s28 = sshll.u32 [#allocation5], 4
      %s29 = int_to_ptr.vmem [resolvable:$true] %s28
      %34 = dma.hbm_to_vmem [thread:$0]  %s27, 4096, %s29, [#allocation6], 128, 128, 8
    $region9: #{tpu_custom_call.1} parent=1 // pred_fallthru
      _
    // Predicated region
    $region10: #{tpu_custom_call.1} parent=1 // pred_check
      _
    $region11: #{tpu_custom_call.1} parent=1 // pred_check_branch
      %36 = sbr.rel (0) target = $region13
    $region12: #{tpu_custom_call.1} parent=1 // pred_region
      %38 = vsyncadd [#allocation6], 0
      %s40 = sshll.u32 %s2, 4
      %s41 = int_to_ptr.hbm [resolvable:$true] %s40
      %s42 = sshll.u32 [#allocation7], 4
      %s43 = int_to_ptr.vmem [resolvable:$true] %s42
      %45 = dma.hbm_to_vmem [thread:$0]  %s41, 64, %s43, [#allocation6]
    $region13: #{tpu_custom_call.1} parent=1 // pred_fallthru
      _
    // Predicated region
    $region14: #{tpu_custom_call.1} parent=1 // pred_check
      _
    $region15: #{tpu_custom_call.1} parent=1 // pred_check_branch
      %47 = sbr.rel (0) target = $region17
    $region16: #{tpu_custom_call.1} parent=1 // pred_region
      %49 = dma.done [#allocation3], 128
    $region17: #{tpu_custom_call.1} parent=1 // pred_fallthru
      _
    // Predicated region
    $region18: #{tpu_custom_call.1} parent=1 // pred_check
      _
    $region19: #{tpu_custom_call.1} parent=1 // pred_check_branch
      %51 = sbr.rel (0) target = $region21
    $region20: #{tpu_custom_call.1} parent=1 // pred_region
      %53 = dma.done [#allocation6], 4096
    $region21: #{tpu_custom_call.1} parent=1 // pred_fallthru
      _
    // Predicated region
    $region22: #{tpu_custom_call.1} parent=1 // pred_check
      _
    $region23: #{tpu_custom_call.1} parent=1 // pred_check_branch
      %55 = sbr.rel (0) target = $region25
    $region24: #{tpu_custom_call.1} parent=1 // pred_region
      %57 = dma.done [#allocation6], 64
    $region25: #{tpu_custom_call.1} parent=1 // pred_fallthru
      _
    %v58 = vld [vmem:[#allocation2] sm:$0xff]
    %v59 = vld [vmem:[#allocation5] sm:$0xff]
    %v60 = vld [vmem:[#allocation5 + $0x8] sm:$0xff]
    %v61 = vld [vmem:[#allocation7] sm:$0x1]
    %v62 = vperm.slane %v61, 0
    %vm63 = vcmask 130048
    %v65 = vsel %vm63, %v58, 0
    %67 = vmatpush.msra.mxu0 0.0
    %68 = vmatpush.msra.mxu0 0.0
    %69 = vmatpush.msra.mxu0 0.0
    %70 = vmatpush.msra.mxu0 0.0
    %71 = vmatpush.msra.mxu0 0.0
    %72 = vmatpush.msra.mxu0 0.0
    %73 = vmatpush.msra.mxu0 0.0
    %74 = vmatpush.msra.mxu0 0.0
    %75 = vmatpush.msra.mxu0 0.0
    %76 = vmatpush.msra.mxu0 0.0
    %77 = vmatpush.msra.mxu0 0.0
    %78 = vmatpush.msra.mxu0 0.0
    %79 = vmatpush.msra.mxu0 0.0
    %80 = vmatpush.msra.mxu0 0.0
    %81 = vmatpush.msra.mxu0 %v60
    %82 = vmatpush.msra.mxu0 %v59
    %83 = vmatmul.f32.gmra.mxu0 %v65
    %v84 = vpop.f32.mrf.mxu0
    %v85 = vadd.f32 %v62, %v84
    %86 = vdwg.mxu0
    %v87 = vmax.f32 %v85, 0.0
    %s88 = scalar_lea.vmem [#allocation5], 128
    %v89 = vld [vmem:[%s88] sm:$0xff]
    %v90 = vld [vmem:[%s88 + $0x8] sm:$0xff]
    %v91 = vld [vmem:[%s88 + $0x10] sm:$0xff]
    %v92 = vld [vmem:[%s88 + $0x18] sm:$0xff]
    %v93 = vld [vmem:[%s88 + $0x20] sm:$0xff]
    %v94 = vld [vmem:[%s88 + $0x28] sm:$0xff]
    %v95 = vld [vmem:[%s88 + $0x30] sm:$0xff]
    %v96 = vld [vmem:[%s88 + $0x38] sm:$0xff]
    %v97 = vld [vmem:[%s88 + $0x40] sm:$0xff]
    %v98 = vld [vmem:[%s88 + $0x48] sm:$0xff]
    %v99 = vld [vmem:[%s88 + $0x50] sm:$0xff]
    %v100 = vld [vmem:[%s88 + $0x58] sm:$0xff]
    %v101 = vld [vmem:[%s88 + $0x60] sm:$0xff]
    %v102 = vld [vmem:[%s88 + $0x68] sm:$0xff]
    %v103 = vld [vmem:[%s88 + $0x70] sm:$0xff]
    %v104 = vld [vmem:[%s88 + $0x78] sm:$0xff]
    %v105 = vld [vmem:[#allocation7 + $0x1] sm:$0x1]
    %v106 = vperm.slane %v105, 0
    %107 = vmatpush.msra.mxu0 %v104
    %108 = vmatpush.msra.mxu0 %v103
    %109 = vmatpush.msra.mxu0 %v102
    %110 = vmatpush.msra.mxu0 %v101
    %111 = vmatpush.msra.mxu0 %v100
    %112 = vmatpush.msra.mxu0 %v99
    %113 = vmatpush.msra.mxu0 %v98
    %114 = vmatpush.msra.mxu0 %v97
    %115 = vmatpush.msra.mxu0 %v96
    %116 = vmatpush.msra.mxu0 %v95
    %117 = vmatpush.msra.mxu0 %v94
    %118 = vmatpush.msra.mxu0 %v93
    %119 = vmatpush.msra.mxu0 %v92
    %120 = vmatpush.msra.mxu0 %v91
    %121 = vmatpush.msra.mxu0 %v90
    %122 = vmatpush.msra.mxu0 %v89
    %123 = vmatmul.f32.gmra.mxu0 %v87
    %v124 = vpop.f32.mrf.mxu0
    %v125 = vadd.f32 %v106, %v124
    %126 = vdwg.mxu0
    %v127 = vmax.f32 %v125, 0.0
    %v128 = vld [vmem:[#allocation7 + $0x2] sm:$0x1]
    %v129 = vld [vmem:[#allocation7 + $0x3] sm:$0x1]
    %131 = vset.pattern.permute.xlu0 0
    %132 = vperm.xlu0 %131, %v129
    %v133 = vpop.permute.xlu0 %132
    %135 = vmatpush.xpose.msra.mxu0 0.0
    %136 = vmatpush.xpose.msra.mxu0 0.0
    %137 = vmatpush.xpose.msra.mxu0 0.0
    %138 = vmatpush.xpose.msra.mxu0 0.0
    %139 = vmatpush.xpose.msra.mxu0 0.0
    %140 = vmatpush.xpose.msra.mxu0 0.0
    %141 = vmatpush.xpose.msra.mxu0 0.0
    %142 = vmatpush.xpose.msra.mxu0 0.0
    %143 = vmatpush.xpose.msra.mxu0 0.0
    %144 = vmatpush.xpose.msra.mxu0 0.0
    %145 = vmatpush.xpose.msra.mxu0 0.0
    %146 = vmatpush.xpose.msra.mxu0 0.0
    %147 = vmatpush.xpose.msra.mxu0 0.0
    %148 = vmatpush.xpose.msra.mxu0 0.0
    %149 = vmatpush.xpose.msra.mxu0 0.0
    %150 = vmatpush.xpose.msra.mxu0 %v127
    %151 = vmatmul.f32.gmra.mxu0 %v128
    %v152 = vpop.f32.mrf.mxu0
    %v153 = vadd.f32 %v133, %v152
    %154 = vdwg.mxu0
    %vm155 = vcmask 57344
    %156 = vst.msk [vmem:[#allocation8] sm:$0x1] %vm155, %v153
    // Predicated region
    $region26: #{tpu_custom_call.1} parent=1 // pred_check
      _
    $region27: #{tpu_custom_call.1} parent=1 // pred_check_branch
      %158 = sbr.rel (0) target = $region29
    $region28: #{tpu_custom_call.1} parent=1 // pred_region
      %160 = vsyncadd [#allocation4], 0
      %s162 = sshll.u32 [#allocation8], 4
      %s163 = int_to_ptr.vmem [resolvable:$true] %s162
      %s164 = sshll.u32 %s3, 4
      %s165 = int_to_ptr.hbm [resolvable:$true] %s164
      %167 = dma.vmem_to_hbm [thread:$0]  %s163, 16, %s165, [#allocation4]
    $region29: #{tpu_custom_call.1} parent=1 // pred_fallthru
      _
    // Predicated region
    $region30: #{tpu_custom_call.1} parent=1 // pred_check
      _
    $region31: #{tpu_custom_call.1} parent=1 // pred_check_branch
      %169 = sbr.rel (0) target = $region33
    $region32: #{tpu_custom_call.1} parent=1 // pred_region
      %171 = dma.done [#allocation4], 16
    $region33: #{tpu_custom_call.1} parent=1 // pred_fallthru
      _
    %172 = vsyncpa [#allocation3], 1
    %173 = vsyncpa [#allocation6], 1
    %174 = vsyncpa [#allocation4], 1

</llo_original>
